<compile_context>
chip_gen: v6e
topology: v6e:2x2x1
jax: 0.10.0
libtpu: 0.0.40
codegen_flags: <defaults>
</compile_context>

<pallas_src>
import functools

import numpy as np
import jax
import jax.numpy as jnp
from jax.experimental import pallas as pl
from jax.experimental.pallas import tpu as pltpu

LANE = 128


# ----------------------------- Pallas kernel ------------------------------- #
def _layernorm1d_kernel(x_ref, g_ref, b_ref, o_ref, *, eps):
    """One (batch-tile, N-tile) block per grid step.

    x_ref : (Bt, C, tN)  input block (native dtype), C on sublanes, N on lanes
    g_ref : (C, 1)       gamma (VMEM resident, reused by every step)
    b_ref : (C, 1)       beta
    o_ref : (Bt, C, tN)  output block (same dtype as input)
    """
    x = x_ref[...].astype(jnp.float32)                       # (Bt, C, tN)
    c = x.shape[1]
    inv_c = jnp.float32(1.0 / c)

    # Fused single sweep over the channel (sublane) axis: E[x] and E[x^2].
    mean = jnp.sum(x, axis=1, keepdims=True) * inv_c          # (Bt,1,tN) XLU
    mean_sq = jnp.sum(x * x, axis=1, keepdims=True) * inv_c   # (Bt,1,tN) XLU
    var = jnp.maximum(mean_sq - mean * mean, 0.0)             # clamp cancellation
    inv_std = jax.lax.rsqrt(var + jnp.float32(eps))           # EUP

    g = g_ref[...].astype(jnp.float32)[None]                  # (1, C, 1)
    b = b_ref[...].astype(jnp.float32)[None]
    o_ref[...] = ((x - mean) * inv_std * g + b).astype(o_ref.dtype)


# --------------------------- Tile-size heuristic ---------------------------- #
def _choose_tiles(B, C, N, itemsize):
    live_budget = 16 << 20      # 2 buffers x (in + out) x block bytes
    step_target = 2 << 20       # aim for >= ~2 MiB HBM traffic per grid step
    col = C * itemsize          # one (C,) column of input OR output

    # N tile: lane-aligned multiple of 128, as large as the budget allows.
    if N <= LANE:
        tn = N                                      # full dim: no (8,128) rule
    else:
        max_tn = max(LANE, (live_budget // (4 * col)) // LANE * LANE)
        tn = min(max(LANE, (N // LANE) * LANE), max_tn)
    grid_n = pl.cdiv(N, tn)

    # Fold batch into the block to amortize the ~0.35us/step overhead while
    # staying inside the live-tile budget and keeping grid steps for megacore.
    bt = 1
    total_steps = B * grid_n
    for cand in range(1, B + 1):
        if B % cand:
            continue
        if 4 * cand * col * tn > live_budget:
            break
        if (B // cand) * grid_n < min(8, total_steps):
            break
        bt = cand
        if 2 * cand * col * tn >= step_target:
            break
    return bt, tn


# ------------------------------ JAX wrapper -------------------------------- #
def layernorm1d_pallas(x, gamma, beta, *, eps=1e-5):
    """LayerNorm over channel dim of x:(B, C, N); output keeps x.dtype."""
    B, C, N = x.shape
    itemsize = x.dtype.itemsize
    bt, tn = _choose_tiles(B, C, N, itemsize)
    grid = (B // bt, pl.cdiv(N, tn))

    g2 = jnp.reshape(gamma, (C, 1))
    b2 = jnp.reshape(beta, (C, 1))
    p_itemsize = g2.dtype.itemsize

    # Actual live VMEM footprint (double-buffered in+out tiles + params).
    live_bytes = 4 * bt * C * tn * itemsize + 4 * C * p_itemsize
    vmem_limit = int(min(32 << 20, max(live_bytes + (2 << 20), 4 << 20)))

    cost = pl.CostEstimate(
        flops=9 * B * C * N,                         # sums, sq, sub, scale, affine
        transcendentals=B * N,                       # rsqrt per column
        bytes_accessed=2 * B * C * N * itemsize + 2 * C * p_itemsize)

    return pl.pallas_call(
        functools.partial(_layernorm1d_kernel, eps=float(eps)),
        out_shape=jax.ShapeDtypeStruct((B, C, N), x.dtype),
        grid=grid,
        in_specs=[
            pl.BlockSpec((bt, C, tn), lambda b, n: (b, 0, n)),
            pl.BlockSpec((C, 1), lambda b, n: (0, 0)),
            pl.BlockSpec((C, 1), lambda b, n: (0, 0)),
        ],
        out_specs=pl.BlockSpec((bt, C, tn), lambda b, n: (b, 0, n)),
        compiler_params=pltpu.CompilerParams(
            dimension_semantics=("parallel", "parallel"),
            vmem_limit_bytes=vmem_limit),
        cost_estimate=cost,
    )(x, g2, b2)


# --------------------------- NumPy reference ------------------------------- #
def _ref_layernorm1d(x, gamma, beta, eps):
    """Reference: ln(x.transpose(1,2)).transpose(1,2) with biased variance."""
    x = np.asarray(x).astype(np.float64)
    xt = np.transpose(x, (0, 2, 1))                            # (B, N, C)
    mean = xt.mean(-1, keepdims=True)
    var = xt.var(-1, keepdims=True)                            # biased, like torch
    out = (xt - mean) / np.sqrt(var + eps)
    out = out * np.asarray(gamma).astype(np.float64) + np.asarray(beta).astype(np.float64)
    return np.transpose(out, (0, 2, 1))                        # (B, C, N) float64


# --------------------------------- main ------------------------------------ #
if __name__ == "__main__":
    key = jax.random.PRNGKey(0)

    def run_case(B, C, N, dtype, atol, key):
        k1, k2, k3 = jax.random.split(key, 3)
        x = jax.random.normal(k1, (B, C, N), jnp.float32).astype(dtype)
        gamma = 1.0 + 0.1 * jax.random.normal(k2, (C,), jnp.float32)
        beta = 0.1 * jax.random.normal(k3, (C,), jnp.float32)

        out = layernorm1d_pallas(x, gamma, beta, eps=1e-5)
        out = jax.block_until_ready(out)
        assert out.dtype == x.dtype, (out.dtype, x.dtype)
        out_np = np.asarray(out).astype(np.float64)

        ref = _ref_layernorm1d(x, gamma, beta, 1e-5)
        assert out_np.shape == ref.shape, (out_np.shape, ref.shape)
        err = np.max(np.abs(out_np - ref))
        assert np.allclose(out_np, ref, atol=atol, rtol=atol), err

    # Lane-aligned f32 case (tiled over N).
    run_case(2, 32, 256, jnp.float32, 1e-4, jax.random.fold_in(key, 0))
    # Tiny / sub-lane-width case (full small blocks).
    run_case(2, 4, 16, jnp.float32, 1e-4, jax.random.fold_in(key, 1))
    # Ragged N (not a multiple of 128): cdiv grid, masked last tile.
    run_case(2, 8, 200, jnp.float32, 1e-4, jax.random.fold_in(key, 2))
    # Native bf16: dtype preserved end-to-end (HBM bytes halved).
    run_case(2, 32, 256, jnp.bfloat16, 2e-2, jax.random.fold_in(key, 3))

    print("KERNEL_OK")
</pallas_src>

<mosaic_0001>
module attributes {stable_mosaic.version = 11 : i64} {
  func.func @_layernorm1d_kernel(%arg0: i32, %arg1: i32, %arg2: memref<1x32x256xf32, #tpu.memory_space<vmem>>, %arg3: memref<32x1xf32, #tpu.memory_space<vmem>>, %arg4: memref<32x1xf32, #tpu.memory_space<vmem>>, %arg5: memref<1x32x256xf32, #tpu.memory_space<vmem>>) attributes {dimension_semantics = [#tpu.dimension_semantics<parallel>, #tpu.dimension_semantics<parallel>], iteration_bounds = array<i64: 2, 1>, scalar_prefetch = 0 : i64, scratch_operands = 0 : i64, tpu.core_type = #tpu.core_type<tc>, window_params = [{transform_indices = @transform_0, window_bounds = array<i64: 1, 32, 256>}, {pipeline_mode = #tpu.pipeline_mode<synchronous>, transform_indices = @transform_1, window_bounds = array<i64: 32, 1>}, {pipeline_mode = #tpu.pipeline_mode<synchronous>, transform_indices = @transform_2, window_bounds = array<i64: 32, 1>}, {transform_indices = @transform_3, window_bounds = array<i64: 1, 32, 256>}]} {
    %c0 = arith.constant 0 : index
    %c0_0 = arith.constant 0 : index
    %c0_1 = arith.constant 0 : index
    %0 = vector.load %arg2[%c0, %c0_0, %c0_1] : memref<1x32x256xf32, #tpu.memory_space<vmem>>, vector<1x32x256xf32>
    %cst = arith.constant dense<0.000000e+00> : vector<1x256xf32>
    %1 = vector.multi_reduction <add>, %0, %cst [1] : vector<1x32x256xf32> to vector<1x256xf32>
    %2 = vector.shape_cast %1 : vector<1x256xf32> to vector<1x1x256xf32>
    %cst_2 = arith.constant 3.125000e-02 : f32
    %3 = vector.broadcast %cst_2 : f32 to vector<1x1x256xf32>
    %4 = arith.mulf %2, %3 : vector<1x1x256xf32>
    %5 = arith.mulf %0, %0 : vector<1x32x256xf32>
    %cst_3 = arith.constant dense<0.000000e+00> : vector<1x256xf32>
    %6 = vector.multi_reduction <add>, %5, %cst_3 [1] : vector<1x32x256xf32> to vector<1x256xf32>
    %7 = vector.shape_cast %6 : vector<1x256xf32> to vector<1x1x256xf32>
    %cst_4 = arith.constant 3.125000e-02 : f32
    %8 = vector.broadcast %cst_4 : f32 to vector<1x1x256xf32>
    %9 = arith.mulf %7, %8 : vector<1x1x256xf32>
    %10 = arith.mulf %4, %4 : vector<1x1x256xf32>
    %11 = arith.subf %9, %10 : vector<1x1x256xf32>
    %cst_5 = arith.constant 0.000000e+00 : f32
    %12 = vector.broadcast %cst_5 : f32 to vector<1x1x256xf32>
    %13 = arith.maximumf %11, %12 : vector<1x1x256xf32>
    %cst_6 = arith.constant 9.99999974E-6 : f32
    %14 = vector.broadcast %cst_6 : f32 to vector<1x1x256xf32>
    %15 = arith.addf %13, %14 : vector<1x1x256xf32>
    %16 = math.rsqrt %15 : vector<1x1x256xf32>
    %c0_7 = arith.constant 0 : index
    %c0_8 = arith.constant 0 : index
    %17 = vector.load %arg3[%c0_7, %c0_8] : memref<32x1xf32, #tpu.memory_space<vmem>>, vector<32x1xf32>
    %18 = vector.shape_cast %17 : vector<32x1xf32> to vector<1x32x1xf32>
    %c0_9 = arith.constant 0 : index
    %c0_10 = arith.constant 0 : index
    %19 = vector.load %arg4[%c0_9, %c0_10] : memref<32x1xf32, #tpu.memory_space<vmem>>, vector<32x1xf32>
    %20 = vector.shape_cast %19 : vector<32x1xf32> to vector<1x32x1xf32>
    %21 = vector.broadcast %4 : vector<1x1x256xf32> to vector<1x32x256xf32>
    %22 = arith.subf %0, %21 : vector<1x32x256xf32>
    %23 = vector.broadcast %16 : vector<1x1x256xf32> to vector<1x32x256xf32>
    %24 = arith.mulf %22, %23 : vector<1x32x256xf32>
    %25 = vector.broadcast %18 : vector<1x32x1xf32> to vector<1x32x256xf32>
    %26 = arith.mulf %24, %25 : vector<1x32x256xf32>
    %27 = vector.broadcast %20 : vector<1x32x1xf32> to vector<1x32x256xf32>
    %28 = arith.addf %26, %27 : vector<1x32x256xf32>
    %c0_11 = arith.constant 0 : index
    %c0_12 = arith.constant 0 : index
    %c0_13 = arith.constant 0 : index
    %29 = vector.load %arg5[%c0_11, %c0_12, %c0_13] : memref<1x32x256xf32, #tpu.memory_space<vmem>>, vector<1x32x256xf32>
    tpu.vector_store %arg5[%c0_11, %c0_12, %c0_13], %28 {strides = array<i32>} : memref<1x32x256xf32, #tpu.memory_space<vmem>>, vector<1x32x256xf32>,
    return
  }
  func.func @transform_0(%arg0: i32, %arg1: i32) -> (i32, i32, i32) {
    %c0_i32 = arith.constant 0 : i32
    %c0_i32_0 = arith.constant 0 : i32
    return %arg0, %c0_i32, %arg1 : i32, i32, i32
  }
  func.func @transform_1(%arg0: i32, %arg1: i32) -> (i32, i32) {
    %c0_i32 = arith.constant 0 : i32
    %c0_i32_0 = arith.constant 0 : i32
    %c0_i32_1 = arith.constant 0 : i32
    return %c0_i32, %c0_i32_0 : i32, i32
  }
  func.func @transform_2(%arg0: i32, %arg1: i32) -> (i32, i32) {
    %c0_i32 = arith.constant 0 : i32
    %c0_i32_0 = arith.constant 0 : i32
    %c0_i32_1 = arith.constant 0 : i32
    return %c0_i32, %c0_i32_0 : i32, i32
  }
  func.func @transform_3(%arg0: i32, %arg1: i32) -> (i32, i32, i32) {
    %c0_i32 = arith.constant 0 : i32
    %c0_i32_0 = arith.constant 0 : i32
    return %arg0, %c0_i32, %arg1 : i32, i32, i32
  }
}

</mosaic_0001>

<llo_original>
// kernel: tpu_custom_call.1
$region0: #{tpu_custom_call.1}
  #allocation0 [shape = 'u32[]', space=smem, size = 0x4, offset = 0x4, fixed_abs, tag = 'smem constant byte address 0x4 - core index']
  #allocation1 [shape = 'u32[144,128]{1,0:T(1,128)}', space=vmem, size = 0x12000, scoped, tag = 'internal scratch']
  %s0 = inlined_call_operand.hbm [shape: f32[2,32,256], index: 0, kind: input, shape index: {}]
  %s1 = inlined_call_operand.vmem [shape: f32[32,1], index: 1, kind: input, shape index: {}]
  %s2 = inlined_call_operand.vmem [shape: f32[32,1], index: 2, kind: input, shape index: {}]
  %s3 = inlined_call_operand.hbm [shape: f32[2,32,256], index: 3, kind: output, shape index: {}]
  %s4 = sld [smem:[#allocation0]]
  $region49: #{tpu_custom_call.1} parent=0
    _
  %s6 = ssub.s32 1, %s4
  %s7 = scalar_select 0, %s6, %s4
  $region1: #{tpu_custom_call.1} parent=0
    #allocation2 [shape = 'u8[65536]{0}', space=vmem, size = 0x10000, scoped, tag = 'input window, operand 0']
    #allocation3 [shape = 's32[2]{0}', space=sflag, size = 0x8, scoped, tag = 'scoped memory for tpu_custom_call.1']
    #allocation4 [shape = 's32[2]{0}', space=sflag, size = 0x8, scoped, tag = 'scoped memory for tpu_custom_call.1']
    #allocation5 [shape = 'u8[65536]{0}', space=vmem, size = 0x10000, scoped, tag = 'output window, operand 0']
    %8 = vsyncpa [#allocation3], 0
    %s9 = scalar_lea.sflag [#allocation3], 1
    %10 = vsyncpa %s9, 0
    %11 = vsyncpa [#allocation4], 0
    %s12 = scalar_lea.sflag [#allocation4], 1
    %13 = vsyncpa %s12, 0
    loop: start=0, step=1, limit=4
    $region2: #{tpu_custom_call.1} parent=1 // loop_pre_header
      _
    $region3: #{tpu_custom_call.1} parent=1 // loop_header
      %s15 = sphi 0, %s19
      %p16 = scmp.ge.s32.totalorder %s15, 4
      %s22 = sphi 0, %s34
      %s23 = sphi 0, %s30
      %s24 = sphi 0, %s22
      %s25 = sphi 0, %s23
      %s26 = sphi 0, %s24
      %s27 = sphi 0, %s25
      %s39 = sphi 0, %s41
      %s42 = sphi 0, %s39
      %s43 = sphi 0, %s42
      %s59 = sphi 0, %s43
      %s63 = sphi 0, %s63
      %s65 = sphi 0, %s63
      %s66 = sphi 0, %s65
      %s80 = sphi 0, %s66
      %s84 = sphi 0, %s84
      %s86 = sphi 0, %s84
      %s87 = sphi 0, %s86
      %s101 = sphi 0, %s87
      %s109 = sphi 0, %s111
      %s112 = sphi 0, %s109
      %s113 = sphi 0, %s112
      %s129 = sphi 0, %s113
    $region4: #{tpu_custom_call.1} parent=1 // loop_header_branch
      %18 = sbr.rel (%p16) target = $region8
    $region5: #{tpu_custom_call.1} parent=1 // loop_body
      %s20 = ssub.s32 %s15, 1
      %s21 = ssub.s32 %s15, 2
      %s28 = sadd.s32 1, %s23
      %p29 = scmp.ge.s32.totalorder %s28, 1
      %s30 = scalar_select %p29, 0, %s28
      %s31 = sadd.s32 1, %s22
      %s32 = scalar_select %p29, %s31, %s22
      %p33 = scmp.ge.s32.totalorder %s32, 2
      %s34 = scalar_select %p33, 0, %s32
      %s35 = ssub.s32 %s22, %s34
      %s36 = ssub.s32 %s23, %s30
      %s37 = sor.u32 %s35, %s36
      %p38 = scmp.eq.s32.totalorder %s37, 0
      %s40 = sadd.s32 %s39, 1
      %s41 = scalar_select %p38, %s39, %s40
      %p44 = pneg %p38
      %p45 = scmp.eq.s32.totalorder %s15, 1
      %p46 = por %p44, %p45
      %p47 = scmp.ne.s32.totalorder %s39, %s42
      %p48 = scmp.eq.s32.totalorder %s15, 0
      %p49 = por %p47, %p48
      %p50 = scmp.ne.s32.totalorder %s39, %s42
      %p51 = scmp.eq.s32.totalorder %s20, 1
      %p52 = por %p50, %p51
      %p53 = scmp.ne.s32.totalorder %s42, %s43
      %p54 = scmp.eq.s32.totalorder %s20, 0
      %p55 = por %p53, %p54
      %p56 = scmp.ne.s32.totalorder %s42, %s43
      %p57 = scmp.eq.s32.totalorder %s21, 1
      %p58 = por %p56, %p57
      %p60 = scmp.ne.s32.totalorder %s43, %s59
      %p61 = scmp.eq.s32.totalorder %s21, 0
      %p62 = por %p60, %p61
      %s64 = sadd.s32 %s63, 1
      %p67 = scmp.eq.s32.totalorder %s15, 1
      %p68 = scmp.ne.s32.totalorder %s63, %s65
      %p69 = scmp.eq.s32.totalorder %s15, 0
      %p70 = por %p68, %p69
      %p71 = scmp.ne.s32.totalorder %s63, %s65
      %p72 = scmp.eq.s32.totalorder %s20, 1
      %p73 = por %p71, %p72
      %p74 = scmp.ne.s32.totalorder %s65, %s66
      %p75 = scmp.eq.s32.totalorder %s20, 0
      %p76 = por %p74, %p75
      %p77 = scmp.ne.s32.totalorder %s65, %s66
      %p78 = scmp.eq.s32.totalorder %s21, 1
      %p79 = por %p77, %p78
      %p81 = scmp.ne.s32.totalorder %s66, %s80
      %p82 = scmp.eq.s32.totalorder %s21, 0
      %p83 = por %p81, %p82
      %s85 = sadd.s32 %s84, 1
      %p88 = scmp.eq.s32.totalorder %s15, 1
      %p89 = scmp.ne.s32.totalorder %s84, %s86
      %p90 = scmp.eq.s32.totalorder %s15, 0
      %p91 = por %p89, %p90
      %p92 = scmp.ne.s32.totalorder %s84, %s86
      %p93 = scmp.eq.s32.totalorder %s20, 1
      %p94 = por %p92, %p93
      %p95 = scmp.ne.s32.totalorder %s86, %s87
      %p96 = scmp.eq.s32.totalorder %s20, 0
      %p97 = por %p95, %p96
      %p98 = scmp.ne.s32.totalorder %s86, %s87
      %p99 = scmp.eq.s32.totalorder %s21, 1
      %p100 = por %p98, %p99
      %p102 = scmp.ne.s32.totalorder %s87, %s101
      %p103 = scmp.eq.s32.totalorder %s21, 0
      %p104 = por %p102, %p103
      %s105 = ssub.s32 %s22, %s34
      %s106 = ssub.s32 %s23, %s30
      %s107 = sor.u32 %s105, %s106
      %p108 = scmp.eq.s32.totalorder %s107, 0
      %s110 = sadd.s32 %s109, 1
      %s111 = scalar_select %p108, %s109, %s110
      %p114 = pneg %p108
      %p115 = scmp.eq.s32.totalorder %s15, 1
      %p116 = por %p114, %p115
      %p117 = scmp.ne.s32.totalorder %s109, %s112
      %p118 = scmp.eq.s32.totalorder %s15, 0
      %p119 = por %p117, %p118
      %p120 = scmp.ne.s32.totalorder %s109, %s112
      %p121 = scmp.eq.s32.totalorder %s20, 1
      %p122 = por %p120, %p121
      %p123 = scmp.ne.s32.totalorder %s112, %s113
      %p124 = scmp.eq.s32.totalorder %s20, 0
      %p125 = por %p123, %p124
      %p126 = scmp.ne.s32.totalorder %s112, %s113
      %p127 = scmp.eq.s32.totalorder %s21, 1
      %p128 = por %p126, %p127
      %p130 = scmp.ne.s32.totalorder %s113, %s129
      %p131 = scmp.eq.s32.totalorder %s21, 0
      %p132 = por %p130, %p131
      %p133 = scmp.le.s32.totalorder 1, %s15
      %p134 = scmp.lt.s32.totalorder %s15, 3
      %p135 = pnand %p133, %p134
      %p136 = pneg %p135
      // Predicated region
      $region9: #{tpu_custom_call.1} parent=5 // pred_check
        _
      $region10: #{tpu_custom_call.1} parent=5 // pred_check_branch
        %138 = sbr.rel (%p135) target = $region12
      $region11: #{tpu_custom_call.1} parent=5 // pred_region
        %s139 = ssub.s32 %s15, 1
        // Predicated region
        $region13: #{tpu_custom_call.1} parent=11 // pred_check
          %p140 = pneg %p76
        $region14: #{tpu_custom_call.1} parent=11 // pred_check_branch
          %142 = sbr.rel (%p140) target = $region16
        $region15: #{tpu_custom_call.1} parent=11 // pred_region
          _
        $region16: #{tpu_custom_call.1} parent=11 // pred_fallthru
          _
        // Predicated region
        $region17: #{tpu_custom_call.1} parent=11 // pred_check
          %p143 = pneg %p97
        $region18: #{tpu_custom_call.1} parent=11 // pred_check_branch
          %145 = sbr.rel (%p143) target = $region20
        $region19: #{tpu_custom_call.1} parent=11 // pred_region
          _
        $region20: #{tpu_custom_call.1} parent=11 // pred_fallthru
          _
      $region12: #{tpu_custom_call.1} parent=5 // pred_fallthru
        _
      %p146 = scmp.lt.s32.totalorder %s15, 2
      // Predicated region
      $region21: #{tpu_custom_call.1} parent=5 // pred_check
        %p147 = pneg %p146
      $region22: #{tpu_custom_call.1} parent=5 // pred_check_branch
        %149 = sbr.rel (%p147) target = $region24
      $region23: #{tpu_custom_call.1} parent=5 // pred_region
        // Predicated region
        $region25: #{tpu_custom_call.1} parent=23 // pred_check
          %p150 = pneg %p49
        $region26: #{tpu_custom_call.1} parent=23 // pred_check_branch
          %152 = sbr.rel (%p150) target = $region28
        $region27: #{tpu_custom_call.1} parent=23 // pred_region
          %s153 = sand.u32 %s39, 1
          %s154 = scalar_lea.sflag [#allocation3], %s153
          %s155 = sand.u32 %s39, 1
          %s156 = smul.addr %s155, 64
          %s157 = scalar_lea.vmem [#allocation2], %s156
          %s158 = smul.u32 2, %s23
          %s160 = ssub.s32 1024, 1024
          %161 = vsyncadd %s154, %s160
          %s162 = smul.addr %s22, 8
          %s163 = sadd.s32 %s158, %s162
          %s164 = smul.addr %s163, 128
          %s165 = scalar_lea.hbm %s0, %s164
          %s166 = sshll.u32 %s157, 4
          %s167 = int_to_ptr.vmem [resolvable:$true] %s166
          %172 = dma.hbm_to_vmem [thread:$0]  %s165, 1024, %s167, %s154, 256, 256, 16
        $region28: #{tpu_custom_call.1} parent=23 // pred_fallthru
          _
      $region24: #{tpu_custom_call.1} parent=5 // pred_fallthru
        _
      %p173 = scmp.le.s32.totalorder 1, %s15
      %p174 = scmp.lt.s32.totalorder %s15, 3
      %p175 = pnand %p173, %p174
      %p176 = pneg %p175
      // Predicated region
      $region29: #{tpu_custom_call.1} parent=5 // pred_check
        _
      $region30: #{tpu_custom_call.1} parent=5 // pred_check_branch
        %178 = sbr.rel (%p175) target = $region32
      $region31: #{tpu_custom_call.1} parent=5 // pred_region
        %s179 = ssub.s32 %s15, 1
        %s180 = sand.u32 %s42, 1
        %s181 = scalar_lea.sflag [#allocation3], %s180
        %s182 = sand.u32 %s42, 1
        %s183 = smul.addr %s182, 64
        %s184 = scalar_lea.vmem [#allocation2], %s183
        // Predicated region
        $region33: #{tpu_custom_call.1} parent=31 // pred_check
          %p185 = pneg %p55
        $region34: #{tpu_custom_call.1} parent=31 // pred_check_branch
          %187 = sbr.rel (%p185) target = $region36
        $region35: #{tpu_custom_call.1} parent=31 // pred_region
          %188 = dma.done %s181, 1024
        $region36: #{tpu_custom_call.1} parent=31 // pred_fallthru
          _
        %s189 = sand.u32 %s42, 1
        %s190 = scalar_lea.sflag [#allocation3], %s189
        %s191 = sand.u32 %s42, 1
        %s192 = smul.addr %s191, 64
        %s193 = scalar_lea.vmem [#allocation2], %s192
        %p194 = pneg %p55
        %p195 = pneg %p52
        %p196 = pneg %p76
        %p197 = pneg %p73
        %p198 = pneg %p97
        %p199 = pneg %p94
        %p200 = pneg %p125
        %p201 = pneg %p122
        %s202 = sand.u32 %s112, 1
        %s203 = scalar_lea.sflag [#allocation4], %s202
        %s204 = sand.u32 %s112, 1
        %s205 = smul.addr %s204, 64
        %s206 = scalar_lea.vmem [#allocation5], %s205
        %s207 = smul.u32 2, %s25
        %s208 = smul.u32 2, %s25
        %v209 = vld [vmem:[%s184] sm:$0xff]
        %v210 = vld [vmem:[%s184 + $0x8] sm:$0xff]
        %v211 = vld [vmem:[%s184 + $0x10] sm:$0xff]
        %v212 = vld [vmem:[%s184 + $0x18] sm:$0xff]
        %v213 = vld [vmem:[%s184 + $0x20] sm:$0xff]
        %v214 = vld [vmem:[%s184 + $0x28] sm:$0xff]
        %v215 = vld [vmem:[%s184 + $0x30] sm:$0xff]
        %v216 = vld [vmem:[%s184 + $0x38] sm:$0xff]
        %v217 = vadd.f32 %v209, %v211
        %v218 = vadd.f32 %v217, %v213
        %v219 = vadd.f32 %v218, %v215
        %v220 = vrot.slane %v219, 4
        %v221 = vadd.f32 %v219, %v220
        %v222 = vrot.slane %v221, 2
        %v223 = vadd.f32 %v221, %v222
        %v224 = vrot.slane %v223, 1
        %v225 = vadd.f32 %v223, %v224
        %v226 = vadd.f32 %v210, %v212
        %v227 = vadd.f32 %v226, %v214
        %v228 = vadd.f32 %v227, %v216
        %v229 = vrot.slane %v228, 4
        %v230 = vadd.f32 %v228, %v229
        %v231 = vrot.slane %v230, 2
        %v232 = vadd.f32 %v230, %v231
        %v233 = vrot.slane %v232, 1
        %v234 = vadd.f32 %v232, %v233
        %v235 = vmul.f32 %v225, 0.03125
        %v236 = vmul.f32 %v234, 0.03125
        %v237 = vmul.f32 %v209, %v209
        %v238 = vmul.f32 %v210, %v210
        %v239 = vmul.f32 %v211, %v211
        %v240 = vmul.f32 %v212, %v212
        %v241 = vmul.f32 %v213, %v213
        %v242 = vmul.f32 %v214, %v214
        %v243 = vmul.f32 %v215, %v215
        %v244 = vmul.f32 %v216, %v216
        %v245 = vadd.f32 %v237, %v239
        %v246 = vadd.f32 %v245, %v241
        %v247 = vadd.f32 %v246, %v243
        %v248 = vrot.slane %v247, 4
        %v249 = vadd.f32 %v247, %v248
        %v250 = vrot.slane %v249, 2
        %v251 = vadd.f32 %v249, %v250
        %v252 = vrot.slane %v251, 1
        %v253 = vadd.f32 %v251, %v252
        %v254 = vadd.f32 %v238, %v240
        %v255 = vadd.f32 %v254, %v242
        %v256 = vadd.f32 %v255, %v244
        %v257 = vrot.slane %v256, 4
        %v258 = vadd.f32 %v256, %v257
        %v259 = vrot.slane %v258, 2
        %v260 = vadd.f32 %v258, %v259
        %v261 = vrot.slane %v260, 1
        %v262 = vadd.f32 %v260, %v261
        %v263 = vmul.f32 %v253, 0.03125
        %v264 = vmul.f32 %v262, 0.03125
        %v265 = vmul.f32 %v235, %v235
        %v266 = vmul.f32 %v236, %v236
        %v267 = vsub.f32 %v263, %v265
        %v268 = vsub.f32 %v264, %v266
        %v269 = vmax.f32 %v267, 0.0
        %v270 = vmax.f32 %v268, 0.0
        %v271 = vadd.f32 %v269, 1e-05
        %v272 = vadd.f32 %v270, 1e-05
        %v273 = vrsqrt.pop %v271
        %v274 = vrsqrt.pop %v272
        %v275 = vld [vmem:[%s1] sm:$0xff]
        %v276 = vld [vmem:[%s1 + $0x8] sm:$0xff]
        %v277 = vld [vmem:[%s1 + $0x10] sm:$0xff]
        %v278 = vld [vmem:[%s1 + $0x18] sm:$0xff]
        %v279 = vld [vmem:[%s2] sm:$0xff]
        %v280 = vld [vmem:[%s2 + $0x8] sm:$0xff]
        %v281 = vld [vmem:[%s2 + $0x10] sm:$0xff]
        %v282 = vld [vmem:[%s2 + $0x18] sm:$0xff]
        %v283 = vsub.f32 %v209, %v235
        %v284 = vsub.f32 %v210, %v236
        %v285 = vsub.f32 %v211, %v235
        %v286 = vsub.f32 %v212, %v236
        %v287 = vsub.f32 %v213, %v235
        %v288 = vsub.f32 %v214, %v236
        %v289 = vsub.f32 %v215, %v235
        %v290 = vsub.f32 %v216, %v236
        %v291 = vmul.f32 %v283, %v273
        %v292 = vmul.f32 %v284, %v274
        %v293 = vmul.f32 %v285, %v273
        %v294 = vmul.f32 %v286, %v274
        %v295 = vmul.f32 %v287, %v273
        %v296 = vmul.f32 %v288, %v274
        %v297 = vmul.f32 %v289, %v273
        %v298 = vmul.f32 %v290, %v274
        %300 = vset.pattern.permute.xlu0 0
        %301 = vperm.xlu0 %300, %v275
        %v302 = vpop.permute.xlu0 %301
        %305 = vset.pattern.permute.xlu0 0
        %306 = vperm.xlu0 %305, %v276
        %v307 = vpop.permute.xlu0 %306
        %310 = vset.pattern.permute.xlu0 0
        %311 = vperm.xlu0 %310, %v277
        %v312 = vpop.permute.xlu0 %311
        %315 = vset.pattern.permute.xlu0 0
        %316 = vperm.xlu0 %315, %v278
        %v317 = vpop.permute.xlu0 %316
        %v319 = vmul.f32 %v291, %v302
        %v320 = vmul.f32 %v292, %v302
        %v321 = vmul.f32 %v293, %v307
        %v322 = vmul.f32 %v294, %v307
        %v323 = vmul.f32 %v295, %v312
        %v324 = vmul.f32 %v296, %v312
        %v325 = vmul.f32 %v297, %v317
        %v326 = vmul.f32 %v298, %v317
        %328 = vset.pattern.permute.xlu0 0
        %329 = vperm.xlu0 %328, %v279
        %v330 = vpop.permute.xlu0 %329
        %333 = vset.pattern.permute.xlu0 0
        %334 = vperm.xlu0 %333, %v280
        %v335 = vpop.permute.xlu0 %334
        %338 = vset.pattern.permute.xlu0 0
        %339 = vperm.xlu0 %338, %v281
        %v340 = vpop.permute.xlu0 %339
        %343 = vset.pattern.permute.xlu0 0
        %344 = vperm.xlu0 %343, %v282
        %v345 = vpop.permute.xlu0 %344
        %v347 = vadd.f32 %v319, %v330
        %v348 = vadd.f32 %v320, %v330
        %v349 = vadd.f32 %v321, %v335
        %v350 = vadd.f32 %v322, %v335
        %v351 = vadd.f32 %v323, %v340
        %v352 = vadd.f32 %v324, %v340
        %v353 = vadd.f32 %v325, %v345
        %v354 = vadd.f32 %v326, %v345
        %355 = vst [vmem:[%s206] sm:$0xff] %v347
        %356 = vst [vmem:[%s206 + $0x8] sm:$0xff] %v348
        %357 = vst [vmem:[%s206 + $0x10] sm:$0xff] %v349
        %358 = vst [vmem:[%s206 + $0x18] sm:$0xff] %v350
        %359 = vst [vmem:[%s206 + $0x20] sm:$0xff] %v351
        %360 = vst [vmem:[%s206 + $0x28] sm:$0xff] %v352
        %361 = vst [vmem:[%s206 + $0x30] sm:$0xff] %v353
        %362 = vst [vmem:[%s206 + $0x38] sm:$0xff] %v354
        %s363 = sand.u32 %s112, 1
        %s364 = scalar_lea.sflag [#allocation4], %s363
        %s365 = sand.u32 %s112, 1
        %s366 = smul.addr %s365, 64
        %s367 = scalar_lea.vmem [#allocation5], %s366
        // Predicated region
        $region37: #{tpu_custom_call.1} parent=31 // pred_check
          %p368 = pneg %p122
        $region38: #{tpu_custom_call.1} parent=31 // pred_check_branch
          %370 = sbr.rel (%p368) target = $region40
        $region39: #{tpu_custom_call.1} parent=31 // pred_region
          %s371 = smul.u32 2, %s25
          %s373 = ssub.s32 1024, 1024
          %374 = vsyncadd %s364, %s373
          %s375 = smul.addr %s24, 8
          %s376 = sadd.s32 %s371, %s375
          %s377 = smul.addr %s376, 128
          %s378 = scalar_lea.hbm %s3, %s377
          %s379 = sshll.u32 %s367, 4
          %s380 = int_to_ptr.vmem [resolvable:$true] %s379
          %385 = dma.vmem_to_hbm [thread:$0]  %s380, 1024, %s378, %s364, 256, 256, 16
        $region40: #{tpu_custom_call.1} parent=31 // pred_fallthru
          _
      $region32: #{tpu_custom_call.1} parent=5 // pred_fallthru
        _
      %p386 = scmp.le.s32.totalorder 2, %s15
      // Predicated region
      $region41: #{tpu_custom_call.1} parent=5 // pred_check
        %p387 = pneg %p386
      $region42: #{tpu_custom_call.1} parent=5 // pred_check_branch
        %389 = sbr.rel (%p387) target = $region44
      $region43: #{tpu_custom_call.1} parent=5 // pred_region
        %s390 = ssub.s32 %s15, 2
        // Predicated region
        $region45: #{tpu_custom_call.1} parent=43 // pred_check
          %p391 = pneg %p128
        $region46: #{tpu_custom_call.1} parent=43 // pred_check_branch
          %393 = sbr.rel (%p391) target = $region48
        $region47: #{tpu_custom_call.1} parent=43 // pred_region
          %s394 = sand.u32 %s113, 1
          %s395 = scalar_lea.sflag [#allocation4], %s394
          %s396 = sand.u32 %s113, 1
          %s397 = smul.addr %s396, 64
          %s398 = scalar_lea.vmem [#allocation5], %s397
          %399 = dma.done %s395, 1024
        $region48: #{tpu_custom_call.1} parent=43 // pred_fallthru
          _
      $region44: #{tpu_custom_call.1} parent=5 // pred_fallthru
        _
    $region6: #{tpu_custom_call.1} parent=1 // loop_footer
      %s19 = sadd.s32 1, %s15
    $region7: #{tpu_custom_call.1} parent=1 // loop_footer_branch
      %14 = sbr.rel target = $region3
    $region8: #{tpu_custom_call.1} parent=1 // loop_exit
      _
    %400 = vsyncpa [#allocation3], 1
    %s401 = scalar_lea.sflag [#allocation3], 1
    %402 = vsyncpa %s401, 1
    %403 = vsyncpa [#allocation4], 1
    %s404 = scalar_lea.sflag [#allocation4], 1
    %405 = vsyncpa %s404, 1

</llo_original>
